<compile_context>
chip_gen: v6e
topology: v6e:2x2x1
jax: 0.10.0
libtpu: 0.0.40
codegen_flags: <defaults>
</compile_context>

<pallas_src>
import math

import jax
import jax.numpy as jnp
from jax.experimental import pallas as pl
from jax.experimental.pallas import tpu as pltpu

# ---- deterministic GP hyper-parameters (the "model"/"likelihood" params) ----
LENGTHSCALE = 0.7
OUTPUTSCALE = 1.3          # kernel variance -> prior diag k(x,x)
NOISE = 0.05               # Gaussian likelihood noise variance
PRIOR_MEAN = 0.2           # constant prior mean

_VMEM_BUDGET = 36 * 1024 * 1024     # working-set budget (v7x: 64 MiB / TC)
_VMEM_CAP = 56 * 1024 * 1024        # never ask for more than fits on v7x
_PAD_T2 = 1.0e9                     # padded train rows -> exp underflows to 0


def _make_energy_kernel(m_rows, use_bf16_exp):
    """Kernel factory: m_rows = number of LT rows (= M_pad), exp dtype flag."""

    def energy_kernel(xT_ref, x2_ref, tr_ref, t2_ref, lt_ref, out_ref):
        # xT : (D, TN)   bf16  pre-scaled, bf16-rounded test coords (lane=test)
        # x2 : (1, TN)   f32   |x|^2 of the rounded coords
        # tr : (M, D)    bf16  2 * pre-scaled, bf16-rounded train coords
        # t2 : (M, 1)    f32   |t|^2 (padded rows = 1e9 -> kn == 0)
        # lt : (M+16, M) bf16  rows 0..M-1: outputscale*C^-1, row M: alpha^T
        # out: (1, TN)   f32   energy = mean - std, lane-dense
        cross2 = jnp.dot(tr_ref[...], xT_ref[...],
                         preferred_element_type=jnp.float32)       # (M, TN) MXU
        # arg = -(|t|^2 + |x|^2 - 2 t.x) = -d^2/(2 ls^2); clamp fused w/ negate.
        arg = jnp.minimum(cross2 - t2_ref[...] - x2_ref[...], 0.0)  # (M, TN)
        if use_bf16_exp:
            kn = jnp.exp(arg.astype(jnp.bfloat16))                  # bf16 EUP
        else:
            kn = jnp.exp(arg).astype(jnp.bfloat16)                  # f32 EUP
        # One bf16 MXU pass (f32 accumulation) yields both the variance rows
        # (outputscale * C^-1 @ kn) and the fused mean row (alpha^T @ kn).
        tmp = jnp.dot(lt_ref[...], kn,
                      preferred_element_type=jnp.float32)           # (M+16, TN)
        lt_rows = tmp[:m_rows, :]
        reduction = jnp.sum(lt_rows * lt_rows, axis=0, keepdims=True)  # (1, TN)
        mean = PRIOR_MEAN + tmp[m_rows:m_rows + 1, :]                  # (1, TN)
        var = jnp.maximum(OUTPUTSCALE - reduction, 0.0) + NOISE
        out_ref[...] = (mean - jnp.sqrt(var)).astype(out_ref.dtype)

    return energy_kernel


def _use_bf16_exp():
    """bf16 EUP exists on v6e/v7x; keep exp in f32 on v5e and older."""
    try:
        kind = jax.devices()[0].device_kind.lower()
    except Exception:
        return False
    return ("v6" in kind) or ("v7" in kind)


def _vmem_bytes(D, M_pad, M_aug, TN):
    """Approximate per-core VMEM footprint for one grid step."""
    streamed = 2 * (D * TN * 2 + TN * 4 + TN * 4)          # xT, x2, out (x2 buf)
    invariant = M_pad * D * 2 + M_pad * 4 + M_aug * M_pad * 2
    interm = M_pad * TN * (4 + 4 + 2 + 4) + M_aug * TN * 4  # cross/arg/kn/sq, tmp
    return streamed + invariant + interm


def _pick_tile(N, tile_n, D, M_pad, M_aug):
    """Lane-aligned test tile: big (amortize grid-step overhead), VMEM-safe,
    and >= 2 grid steps when possible so both v7x TensorCores get work."""
    TN = min(int(tile_n), pl.cdiv(N, 128) * 128)
    TN = max(128, (TN // 128) * 128)
    while TN > 256 and _vmem_bytes(D, M_pad, M_aug, TN) > _VMEM_BUDGET:
        TN = max(256, ((TN // 2) // 128) * 128)
    while TN > 128 and pl.cdiv(N, TN) < 2:
        TN -= 128
    return TN


def energy_function(x_test, x_train, y_train, *, tile_n=1024):
    """Pure-JAX glue: one-time GP solves + padding, then the Pallas kernel."""
    x_test = jnp.asarray(x_test, jnp.float32)
    x_train = jnp.asarray(x_train, jnp.float32)
    y_train = jnp.asarray(y_train, jnp.float32)

    N, D = x_test.shape
    M = x_train.shape[0]

    # Fold 1/(sqrt(2)*lengthscale) into the coordinates so the squared distance
    # is already the exp argument.
    inv_scale = 1.0 / (math.sqrt(2.0) * LENGTHSCALE)
    ts = x_train * inv_scale                                   # (M, D)
    xs = x_test * inv_scale                                    # (N, D)

    # ---- one-time parameter setup (train-train Cholesky), plain JAX --------
    # TODO(synk): GPyTorch model/likelihood hyper-parameter fitting and the
    # train-train Cholesky factorization have no Pallas equivalent; they stay
    # in XLA as one-time setup feeding the kernel.
    t2_exact = jnp.sum(ts * ts, axis=1)                        # (M,)
    d2 = jnp.maximum(t2_exact[:, None] + t2_exact[None, :] - 2.0 * (ts @ ts.T),
                     0.0)
    K_tt = OUTPUTSCALE * jnp.exp(-d2) + NOISE * jnp.eye(M, dtype=jnp.float32)
    C = jnp.linalg.cholesky(K_tt)                              # lower factor
    alpha = jax.scipy.linalg.cho_solve(
        (C, True), (y_train - PRIOR_MEAN)[:, None])            # (M, 1)
    Cinv = jax.scipy.linalg.solve_triangular(
        C, jnp.eye(M, dtype=jnp.float32), lower=True)          # (M, M)
    lt_f32 = OUTPUTSCALE * Cinv          # ||lt @ kn||^2 = s^2 kn' Ktt^-1 kn
    alpha_s = OUTPUTSCALE * alpha[:, 0]  # outputscale folded into alpha

    # Pre-round the scaled coordinates to bf16 and derive t2/x2 from the
    # rounded values: the in-kernel bf16 cross matmul then reproduces the exact
    # (f32-accumulated) squared distance between the rounded points, avoiding
    # the cancellation problem of a mixed f32/bf16 ||a-b||^2 expansion.
    ts_b = ts.astype(jnp.bfloat16)
    xs_b = xs.astype(jnp.bfloat16)
    t2 = jnp.sum(ts_b.astype(jnp.float32) ** 2, axis=1)        # (M,)
    x2 = jnp.sum(xs_b.astype(jnp.float32) ** 2, axis=1)        # (N,)

    # ---- padding to TPU-friendly shapes -------------------------------------
    # M padded to a lane/MXU-aligned multiple of 128 (zero padding is exact:
    # padded LT rows/cols are zero and padded t2 rows make kn underflow to 0).
    M_pad = max(128, pl.cdiv(M, 128) * 128)
    M_aug = M_pad + 16                     # +16 bf16-packed rows, row M_pad = alpha^T
    TN = _pick_tile(N, tile_n, D, M_pad, M_aug)
    N_pad = pl.cdiv(N, TN) * TN

    xT = jnp.zeros((D, N_pad), jnp.bfloat16).at[:, :N].set(xs_b.T)
    x2c = jnp.zeros((1, N_pad), jnp.float32).at[0, :N].set(x2)
    # Factor 2 folded into the train coords (exact in bf16: *2 is a power of 2).
    tr2 = jnp.zeros((M_pad, D), jnp.bfloat16).at[:M, :].set(2.0 * ts_b)
    t2c = jnp.full((M_pad, 1), _PAD_T2, jnp.float32).at[:M, 0].set(t2)
    lt_aug = jnp.zeros((M_aug, M_pad), jnp.bfloat16)
    lt_aug = lt_aug.at[:M, :M].set(lt_f32.astype(jnp.bfloat16))
    lt_aug = lt_aug.at[M_pad, :M].set(alpha_s.astype(jnp.bfloat16))

    # VMEM limit derived from the actual footprint, capped to fit v7x's 64 MiB.
    # TODO(synk): for very large M (M_pad >~ 2k) LT should be streamed in
    # column tiles over a second "arbitrary" grid axis with a VMEM accumulator;
    # for moderate M it stays fully resident (single-buffered) here.
    need = _vmem_bytes(D, M_pad, M_aug, TN)
    vmem_limit = int(min(need + 16 * 1024 * 1024, _VMEM_CAP))
    cost = pl.CostEstimate(
        flops=int(2 * M_pad * N_pad * D + 2 * M_aug * M_pad * N_pad
                  + 8 * M_pad * N_pad),
        transcendentals=int(M_pad * N_pad),
        bytes_accessed=int(xT.nbytes + x2c.nbytes + tr2.nbytes + t2c.nbytes
                           + lt_aug.nbytes + 4 * N_pad),
    )

    kernel = _make_energy_kernel(M_pad, _use_bf16_exp())

    def _specs(single_buffer_invariants):
        def inv(shape):
            idx = lambda i: (0,) * len(shape)
            if single_buffer_invariants:
                # Grid-invariant inputs need no double buffer: halves their
                # VMEM (matters for large M, especially on v7x's 64 MiB/TC).
                return pl.BlockSpec(shape, idx, pipeline_mode=pl.Buffered(1))
            return pl.BlockSpec(shape, idx)

        return [
            pl.BlockSpec((D, TN), lambda i: (0, i)),   # test coords tile (bf16)
            pl.BlockSpec((1, TN), lambda i: (0, i)),   # |x|^2 tile
            inv((M_pad, D)),                           # 2*train coords (bf16)
            inv((M_pad, 1)),                           # |t|^2
            inv((M_aug, M_pad)),                       # [s*C^-1 ; alpha^T] bf16
        ]

    def _run(single_buffer_invariants):
        return pl.pallas_call(
            kernel,
            out_shape=jax.ShapeDtypeStruct((1, N_pad), jnp.float32),
            grid=(N_pad // TN,),
            in_specs=_specs(single_buffer_invariants),
            out_specs=pl.BlockSpec((1, TN), lambda i: (0, i)),  # lane-dense out
            compiler_params=pltpu.CompilerParams(
                dimension_semantics=("parallel",),              # megacore on v7x
                vmem_limit_bytes=vmem_limit,
            ),
            cost_estimate=cost,
        )(xT, x2c, tr2, t2c, lt_aug)

    try:
        out = _run(True)
    except Exception:
        # Fallback for jax versions without BlockSpec(pipeline_mode=...).
        out = _run(False)

    return out[0, :N]   # energy per test point, shape (N,)


def energy_reference(x_test, x_train, y_train):
    """Plain-JAX (f32) reference of the same GP predictive energy."""
    x_test = jnp.asarray(x_test, jnp.float32)
    x_train = jnp.asarray(x_train, jnp.float32)
    y_train = jnp.asarray(y_train, jnp.float32)
    ls2 = 2.0 * LENGTHSCALE * LENGTHSCALE

    def kfun(a, b):
        d2 = (jnp.sum(a * a, axis=1)[:, None]
              + jnp.sum(b * b, axis=1)[None, :] - 2.0 * a @ b.T)
        return OUTPUTSCALE * jnp.exp(-jnp.maximum(d2, 0.0) / ls2)

    M = x_train.shape[0]
    K_tt = kfun(x_train, x_train) + NOISE * jnp.eye(M, dtype=jnp.float32)
    K_star = kfun(x_test, x_train)
    C = jnp.linalg.cholesky(K_tt)
    alpha = jax.scipy.linalg.cho_solve((C, True), y_train - PRIOR_MEAN)
    mean = PRIOR_MEAN + K_star @ alpha
    v = jax.scipy.linalg.cho_solve((C, True), K_star.T)        # (M, N)
    var = jnp.maximum(OUTPUTSCALE - jnp.sum(K_star * v.T, axis=1), 0.0) + NOISE
    return mean - jnp.sqrt(var)


if __name__ == "__main__":
    key = jax.random.PRNGKey(0)
    k1, k2, k3, k4, k5, k6 = jax.random.split(key, 6)

    # Small deterministic config (single tile).
    N, M, D = 8, 16, 4
    x_test = jax.random.normal(k1, (N, D), dtype=jnp.float32)
    x_train = jax.random.normal(k2, (M, D), dtype=jnp.float32)
    y_train = jnp.sin(jnp.sum(x_train, axis=1)) + 0.1 * jax.random.normal(
        k3, (M,), dtype=jnp.float32)

    energy = energy_function(x_test, x_train, y_train)
    jax.block_until_ready(energy)
    assert energy.shape == (N,)
    ref = energy_reference(x_test, x_train, y_train)
    # Tolerance reflects the bf16 MXU/EUP paths (f32 accumulation throughout).
    assert jnp.allclose(energy, ref, atol=2e-2, rtol=2e-2), (energy, ref)

    # Larger config exercising multi-tile pipelining (>= 2 grid steps).
    N2, M2 = 300, 40
    x_test2 = jax.random.normal(k4, (N2, D), dtype=jnp.float32)
    x_train2 = jax.random.normal(k5, (M2, D), dtype=jnp.float32)
    y_train2 = jnp.sin(jnp.sum(x_train2, axis=1)) + 0.1 * jax.random.normal(
        k6, (M2,), dtype=jnp.float32)
    energy2 = energy_function(x_test2, x_train2, y_train2)
    jax.block_until_ready(energy2)
    assert energy2.shape == (N2,)
    ref2 = energy_reference(x_test2, x_train2, y_train2)
    # Slightly looser bound: larger config accumulates more end-to-end bf16
    # rounding; this check is mainly structural (tiling / pipelining).
    assert jnp.allclose(energy2, ref2, atol=5e-2, rtol=5e-2), (energy2, ref2)

    print("KERNEL_OK")
</pallas_src>

<mosaic_0001>
module attributes {stable_mosaic.version = 11 : i64} {
  func.func @energy_kernel(%arg0: i32, %arg1: memref<4x128xbf16, #tpu.memory_space<vmem>>, %arg2: memref<1x128xf32, #tpu.memory_space<vmem>>, %arg3: memref<128x4xbf16, #tpu.memory_space<vmem>>, %arg4: memref<128x1xf32, #tpu.memory_space<vmem>>, %arg5: memref<144x128xbf16, #tpu.memory_space<vmem>>, %arg6: memref<1x128xf32, #tpu.memory_space<vmem>>) attributes {dimension_semantics = [#tpu.dimension_semantics<parallel>], iteration_bounds = array<i64: 1>, scalar_prefetch = 0 : i64, scratch_operands = 0 : i64, tpu.core_type = #tpu.core_type<tc>, window_params = [{transform_indices = @transform_0, window_bounds = array<i64: 4, 128>}, {transform_indices = @transform_1, window_bounds = array<i64: 1, 128>}, {pipeline_mode = #tpu.pipeline_mode<synchronous>, transform_indices = @transform_2, window_bounds = array<i64: 128, 4>}, {pipeline_mode = #tpu.pipeline_mode<synchronous>, transform_indices = @transform_3, window_bounds = array<i64: 128, 1>}, {pipeline_mode = #tpu.pipeline_mode<synchronous>, transform_indices = @transform_4, window_bounds = array<i64: 144, 128>}, {transform_indices = @transform_5, window_bounds = array<i64: 1, 128>}]} {
    %c0 = arith.constant 0 : index
    %c0_0 = arith.constant 0 : index
    %0 = vector.load %arg3[%c0, %c0_0] : memref<128x4xbf16, #tpu.memory_space<vmem>>, vector<128x4xbf16>
    %c0_1 = arith.constant 0 : index
    %c0_2 = arith.constant 0 : index
    %1 = vector.load %arg1[%c0_1, %c0_2] : memref<4x128xbf16, #tpu.memory_space<vmem>>, vector<4x128xbf16>
    %cst = arith.constant dense<0.000000e+00> : vector<128x128xf32>
    %2 = tpu.matmul %0, %1, %cst {dimension_numbers = #tpu.dot_dimension_numbers<[1], [0], [0], [1], [0, 0, 1, 1], [], []>} : vector<128x4xbf16>, vector<4x128xbf16>, vector<128x128xf32> -> vector<128x128xf32>
    %c0_3 = arith.constant 0 : index
    %c0_4 = arith.constant 0 : index
    %3 = vector.load %arg4[%c0_3, %c0_4] : memref<128x1xf32, #tpu.memory_space<vmem>>, vector<128x1xf32>
    %4 = vector.broadcast %3 : vector<128x1xf32> to vector<128x128xf32>
    %5 = arith.subf %2, %4 : vector<128x128xf32>
    %c0_5 = arith.constant 0 : index
    %c0_6 = arith.constant 0 : index
    %6 = vector.load %arg2[%c0_5, %c0_6] : memref<1x128xf32, #tpu.memory_space<vmem>>, vector<1x128xf32>
    %7 = vector.broadcast %6 : vector<1x128xf32> to vector<128x128xf32>
    %8 = arith.subf %5, %7 : vector<128x128xf32>
    %cst_7 = arith.constant 0.000000e+00 : f32
    %9 = vector.broadcast %cst_7 : f32 to vector<128x128xf32>
    %10 = arith.minimumf %8, %9 : vector<128x128xf32>
    %11 = math.exp %10 : vector<128x128xf32>
    %12 = arith.truncf %11 : vector<128x128xf32> to vector<128x128xbf16>
    %c0_8 = arith.constant 0 : index
    %c0_9 = arith.constant 0 : index
    %13 = vector.load %arg5[%c0_8, %c0_9] : memref<144x128xbf16, #tpu.memory_space<vmem>>, vector<144x128xbf16>
    %cst_10 = arith.constant dense<0.000000e+00> : vector<144x128xf32>
    %14 = tpu.matmul %13, %12, %cst_10 {dimension_numbers = #tpu.dot_dimension_numbers<[1], [0], [0], [1], [0, 0, 1, 1], [], []>} : vector<144x128xbf16>, vector<128x128xbf16>, vector<144x128xf32> -> vector<144x128xf32>
    %15 = vector.extract_strided_slice %14 {offsets = [0, 0], sizes = [128, 128], strides = [1, 1]} : vector<144x128xf32> to vector<128x128xf32>
    %16 = arith.mulf %15, %15 : vector<128x128xf32>
    %cst_11 = arith.constant dense<0.000000e+00> : vector<128xf32>
    %17 = vector.multi_reduction <add>, %16, %cst_11 [0] : vector<128x128xf32> to vector<128xf32>
    %18 = vector.shape_cast %17 : vector<128xf32> to vector<1x128xf32>
    %19 = vector.extract_strided_slice %14 {offsets = [128, 0], sizes = [1, 128], strides = [1, 1]} : vector<144x128xf32> to vector<1x128xf32>
    %cst_12 = arith.constant 2.000000e-01 : f32
    %20 = vector.broadcast %cst_12 : f32 to vector<1x128xf32>
    %21 = arith.addf %20, %19 : vector<1x128xf32>
    %cst_13 = arith.constant 1.300000e+00 : f32
    %22 = vector.broadcast %cst_13 : f32 to vector<1x128xf32>
    %23 = arith.subf %22, %18 : vector<1x128xf32>
    %cst_14 = arith.constant 0.000000e+00 : f32
    %24 = vector.broadcast %cst_14 : f32 to vector<1x128xf32>
    %25 = arith.maximumf %23, %24 : vector<1x128xf32>
    %cst_15 = arith.constant 5.000000e-02 : f32
    %26 = vector.broadcast %cst_15 : f32 to vector<1x128xf32>
    %27 = arith.addf %25, %26 : vector<1x128xf32>
    %28 = math.sqrt %27 : vector<1x128xf32>
    %29 = arith.subf %21, %28 : vector<1x128xf32>
    %c0_16 = arith.constant 0 : index
    %c0_17 = arith.constant 0 : index
    %30 = vector.load %arg6[%c0_16, %c0_17] : memref<1x128xf32, #tpu.memory_space<vmem>>, vector<1x128xf32>
    tpu.vector_store %arg6[%c0_16, %c0_17], %29 {strides = array<i32>} : memref<1x128xf32, #tpu.memory_space<vmem>>, vector<1x128xf32>,
    return
  }
  func.func @transform_0(%arg0: i32) -> (i32, i32) {
    %c0_i32 = arith.constant 0 : i32
    %c0_i32_0 = arith.constant 0 : i32
    return %c0_i32, %arg0 : i32, i32
  }
  func.func @transform_1(%arg0: i32) -> (i32, i32) {
    %c0_i32 = arith.constant 0 : i32
    %c0_i32_0 = arith.constant 0 : i32
    return %c0_i32, %arg0 : i32, i32
  }
  func.func @transform_2(%arg0: i32) -> (i32, i32) {
    %c0_i32 = arith.constant 0 : i32
    %c0_i32_0 = arith.constant 0 : i32
    %c0_i32_1 = arith.constant 0 : i32
    return %c0_i32, %c0_i32_0 : i32, i32
  }
  func.func @transform_3(%arg0: i32) -> (i32, i32) {
    %c0_i32 = arith.constant 0 : i32
    %c0_i32_0 = arith.constant 0 : i32
    %c0_i32_1 = arith.constant 0 : i32
    return %c0_i32, %c0_i32_0 : i32, i32
  }
  func.func @transform_4(%arg0: i32) -> (i32, i32) {
    %c0_i32 = arith.constant 0 : i32
    %c0_i32_0 = arith.constant 0 : i32
    %c0_i32_1 = arith.constant 0 : i32
    return %c0_i32, %c0_i32_0 : i32, i32
  }
  func.func @transform_5(%arg0: i32) -> (i32, i32) {
    %c0_i32 = arith.constant 0 : i32
    %c0_i32_0 = arith.constant 0 : i32
    return %c0_i32, %arg0 : i32, i32
  }
}

module attributes {stable_mosaic.version = 11 : i64} {
  func.func @energy_kernel(%arg0: i32, %arg1: memref<4x128xbf16, #tpu.memory_space<vmem>>, %arg2: memref<1x128xf32, #tpu.memory_space<vmem>>, %arg3: memref<128x4xbf16, #tpu.memory_space<vmem>>, %arg4: memref<128x1xf32, #tpu.memory_space<vmem>>, %arg5: memref<144x128xbf16, #tpu.memory_space<vmem>>, %arg6: memref<1x128xf32, #tpu.memory_space<vmem>>) attributes {dimension_semantics = [#tpu.dimension_semantics<parallel>], iteration_bounds = array<i64: 1>, scalar_prefetch = 0 : i64, scratch_operands = 0 : i64, tpu.core_type = #tpu.core_type<tc>, window_params = [{transform_indices = @transform_0, window_bounds = array<i64: 4, 128>}, {transform_indices = @transform_1, window_bounds = array<i64: 1, 128>}, {pipeline_mode = #tpu.pipeline_mode<synchronous>, transform_indices = @transform_2, window_bounds = array<i64: 128, 4>}, {pipeline_mode = #tpu.pipeline_mode<synchronous>, transform_indices = @transform_3, window_bounds = array<i64: 128, 1>}, {pipeline_mode = #tpu.pipeline_mode<synchronous>, transform_indices = @transform_4, window_bounds = array<i64: 144, 128>}, {transform_indices = @transform_5, window_bounds = array<i64: 1, 128>}]} {
    %c0 = arith.constant 0 : index
    %c0_0 = arith.constant 0 : index
    %0 = vector.load %arg3[%c0, %c0_0] : memref<128x4xbf16, #tpu.memory_space<vmem>>, vector<128x4xbf16>
    %c0_1 = arith.constant 0 : index
    %c0_2 = arith.constant 0 : index
    %1 = vector.load %arg1[%c0_1, %c0_2] : memref<4x128xbf16, #tpu.memory_space<vmem>>, vector<4x128xbf16>
    %cst = arith.constant dense<0.000000e+00> : vector<128x128xf32>
    %2 = tpu.matmul %0, %1, %cst {dimension_numbers = #tpu.dot_dimension_numbers<[1], [0], [0], [1], [0, 0, 1, 1], [], []>} : vector<128x4xbf16>, vector<4x128xbf16>, vector<128x128xf32> -> vector<128x128xf32>
    %c0_3 = arith.constant 0 : index
    %c0_4 = arith.constant 0 : index
    %3 = vector.load %arg4[%c0_3, %c0_4] : memref<128x1xf32, #tpu.memory_space<vmem>>, vector<128x1xf32>
    %4 = vector.broadcast %3 : vector<128x1xf32> to vector<128x128xf32>
    %5 = arith.subf %2, %4 : vector<128x128xf32>
    %c0_5 = arith.constant 0 : index
    %c0_6 = arith.constant 0 : index
    %6 = vector.load %arg2[%c0_5, %c0_6] : memref<1x128xf32, #tpu.memory_space<vmem>>, vector<1x128xf32>
    %7 = vector.broadcast %6 : vector<1x128xf32> to vector<128x128xf32>
    %8 = arith.subf %5, %7 : vector<128x128xf32>
    %cst_7 = arith.constant 0.000000e+00 : f32
    %9 = vector.broadcast %cst_7 : f32 to vector<128x128xf32>
    %10 = arith.minimumf %8, %9 : vector<128x128xf32>
    %11 = math.exp %10 : vector<128x128xf32>
    %12 = arith.truncf %11 : vector<128x128xf32> to vector<128x128xbf16>
    %c0_8 = arith.constant 0 : index
    %c0_9 = arith.constant 0 : index
    %13 = vector.load %arg5[%c0_8, %c0_9] : memref<144x128xbf16, #tpu.memory_space<vmem>>, vector<144x128xbf16>
    %cst_10 = arith.constant dense<0.000000e+00> : vector<144x128xf32>
    %14 = tpu.matmul %13, %12, %cst_10 {dimension_numbers = #tpu.dot_dimension_numbers<[1], [0], [0], [1], [0, 0, 1, 1], [], []>} : vector<144x128xbf16>, vector<128x128xbf16>, vector<144x128xf32> -> vector<144x128xf32>
    %15 = vector.extract_strided_slice %14 {offsets = [0, 0], sizes = [128, 128], strides = [1, 1]} : vector<144x128xf32> to vector<128x128xf32>
    %16 = arith.mulf %15, %15 : vector<128x128xf32>
    %cst_11 = arith.constant dense<0.000000e+00> : vector<128xf32>
    %17 = vector.multi_reduction <add>, %16, %cst_11 [0] : vector<128x128xf32> to vector<128xf32>
    %18 = vector.shape_cast %17 : vector<128xf32> to vector<1x128xf32>
    %19 = vector.extract_strided_slice %14 {offsets = [128, 0], sizes = [1, 128], strides = [1, 1]} : vector<144x128xf32> to vector<1x128xf32>
    %cst_12 = arith.constant 2.000000e-01 : f32
    %20 = vector.broadcast %cst_12 : f32 to vector<1x128xf32>
    %21 = arith.addf %20, %19 : vector<1x128xf32>
    %cst_13 = arith.constant 1.300000e+00 : f32
    %22 = vector.broadcast %cst_13 : f32 to vector<1x128xf32>
    %23 = arith.subf %22, %18 : vector<1x128xf32>
    %cst_14 = arith.constant 0.000000e+00 : f32
    %24 = vector.broadcast %cst_14 : f32 to vector<1x128xf32>
    %25 = arith.maximumf %23, %24 : vector<1x128xf32>
    %cst_15 = arith.constant 5.000000e-02 : f32
    %26 = vector.broadcast %cst_15 : f32 to vector<1x128xf32>
    %27 = arith.addf %25, %26 : vector<1x128xf32>
    %28 = math.sqrt %27 : vector<1x128xf32>
    %29 = arith.subf %21, %28 : vector<1x128xf32>
    %c0_16 = arith.constant 0 : index
    %c0_17 = arith.constant 0 : index
    %30 = vector.load %arg6[%c0_16, %c0_17] : memref<1x128xf32, #tpu.memory_space<vmem>>, vector<1x128xf32>
    tpu.vector_store %arg6[%c0_16, %c0_17], %29 {strides = array<i32>} : memref<1x128xf32, #tpu.memory_space<vmem>>, vector<1x128xf32>,
    return
  }
  func.func @transform_0(%arg0: i32) -> (i32, i32) {
    %c0_i32 = arith.constant 0 : i32
    %c0_i32_0 = arith.constant 0 : i32
    return %c0_i32, %arg0 : i32, i32
  }
  func.func @transform_1(%arg0: i32) -> (i32, i32) {
    %c0_i32 = arith.constant 0 : i32
    %c0_i32_0 = arith.constant 0 : i32
    return %c0_i32, %arg0 : i32, i32
  }
  func.func @transform_2(%arg0: i32) -> (i32, i32) {
    %c0_i32 = arith.constant 0 : i32
    %c0_i32_0 = arith.constant 0 : i32
    %c0_i32_1 = arith.constant 0 : i32
    return %c0_i32, %c0_i32_0 : i32, i32
  }
  func.func @transform_3(%arg0: i32) -> (i32, i32) {
    %c0_i32 = arith.constant 0 : i32
    %c0_i32_0 = arith.constant 0 : i32
    %c0_i32_1 = arith.constant 0 : i32
    return %c0_i32, %c0_i32_0 : i32, i32
  }
  func.func @transform_4(%arg0: i32) -> (i32, i32) {
    %c0_i32 = arith.constant 0 : i32
    %c0_i32_0 = arith.constant 0 : i32
    %c0_i32_1 = arith.constant 0 : i32
    return %c0_i32, %c0_i32_0 : i32, i32
  }
  func.func @transform_5(%arg0: i32) -> (i32, i32) {
    %c0_i32 = arith.constant 0 : i32
    %c0_i32_0 = arith.constant 0 : i32
    return %c0_i32, %arg0 : i32, i32
  }
}

</mosaic_0001>

<llo_original>
// kernel: tpu_custom_call.1
$region0: #{tpu_custom_call.1}
  #allocation0 [shape = 'u32[]', space=smem, size = 0x4, offset = 0x4, fixed_abs, tag = 'smem constant byte address 0x4 - core index']
  #allocation1 [shape = 'u32[144,128]{1,0:T(1,128)}', space=vmem, size = 0x12000, scoped, tag = 'internal scratch']
  %s0 = inlined_call_operand.vmem [shape: bf16[4,128], index: 0, kind: input, shape index: {}]
  %s1 = inlined_call_operand.vmem [shape: f32[1,128], index: 1, kind: input, shape index: {}]
  %s2 = inlined_call_operand.vmem [shape: bf16[128,4], index: 2, kind: input, shape index: {}]
  %s3 = inlined_call_operand.vmem [shape: f32[128,1], index: 3, kind: input, shape index: {}]
  %s4 = inlined_call_operand.vmem [shape: bf16[144,128], index: 4, kind: input, shape index: {}]
  %s5 = inlined_call_operand.hbm [shape: f32[1,128], index: 5, kind: output, shape index: {}]
  %s6 = sld [smem:[#allocation0]]
  $region30: #{tpu_custom_call.1} parent=0
    _
  %s8 = ssub.s32 1, %s6
  %s9 = scalar_select 0, %s8, %s6
  $region1: #{tpu_custom_call.1} parent=0
    #allocation2 [shape = 'u8[512]{0}', space=vmem, size = 0x400, scoped, tag = 'output window, operand 0, single buffered']
    #allocation3 [shape = 's32[1]{0}', space=sflag, size = 0x4, scoped, tag = 'scoped memory for tpu_custom_call.1']
    %10 = vsyncpa [#allocation3], 0
    // Predicated region
    $region2: #{tpu_custom_call.1} parent=1 // pred_check
      _
    $region3: #{tpu_custom_call.1} parent=1 // pred_check_branch
      %12 = sbr.rel (0) target = $region5
    $region4: #{tpu_custom_call.1} parent=1 // pred_region
      _
    $region5: #{tpu_custom_call.1} parent=1 // pred_fallthru
      _
    // Predicated region
    $region6: #{tpu_custom_call.1} parent=1 // pred_check
      _
    $region7: #{tpu_custom_call.1} parent=1 // pred_check_branch
      %14 = sbr.rel (0) target = $region9
    $region8: #{tpu_custom_call.1} parent=1 // pred_region
      _
    $region9: #{tpu_custom_call.1} parent=1 // pred_fallthru
      _
    // Predicated region
    $region10: #{tpu_custom_call.1} parent=1 // pred_check
      _
    $region11: #{tpu_custom_call.1} parent=1 // pred_check_branch
      %16 = sbr.rel (0) target = $region13
    $region12: #{tpu_custom_call.1} parent=1 // pred_region
      _
    $region13: #{tpu_custom_call.1} parent=1 // pred_fallthru
      _
    // Predicated region
    $region14: #{tpu_custom_call.1} parent=1 // pred_check
      _
    $region15: #{tpu_custom_call.1} parent=1 // pred_check_branch
      %18 = sbr.rel (0) target = $region17
    $region16: #{tpu_custom_call.1} parent=1 // pred_region
      _
    $region17: #{tpu_custom_call.1} parent=1 // pred_fallthru
      _
    // Predicated region
    $region18: #{tpu_custom_call.1} parent=1 // pred_check
      _
    $region19: #{tpu_custom_call.1} parent=1 // pred_check_branch
      %20 = sbr.rel (0) target = $region21
    $region20: #{tpu_custom_call.1} parent=1 // pred_region
      _
    $region21: #{tpu_custom_call.1} parent=1 // pred_fallthru
      _
    %v22 = vld [vmem:[%s2] sm:$0xf]
    %v23 = vld [vmem:[%s2 + $0x4] sm:$0xf]
    %v24 = vld [vmem:[%s2 + $0x8] sm:$0xf]
    %v25 = vld [vmem:[%s2 + $0xc] sm:$0xf]
    %v26 = vld [vmem:[%s2 + $0x10] sm:$0xf]
    %v27 = vld [vmem:[%s2 + $0x14] sm:$0xf]
    %v28 = vld [vmem:[%s2 + $0x18] sm:$0xf]
    %v29 = vld [vmem:[%s2 + $0x1c] sm:$0xf]
    %v30 = vld [vmem:[%s2 + $0x20] sm:$0xf]
    %v31 = vld [vmem:[%s2 + $0x24] sm:$0xf]
    %v32 = vld [vmem:[%s2 + $0x28] sm:$0xf]
    %v33 = vld [vmem:[%s2 + $0x2c] sm:$0xf]
    %v34 = vld [vmem:[%s2 + $0x30] sm:$0xf]
    %v35 = vld [vmem:[%s2 + $0x34] sm:$0xf]
    %v36 = vld [vmem:[%s2 + $0x38] sm:$0xf]
    %v37 = vld [vmem:[%s2 + $0x3c] sm:$0xf]
    %v38 = vld [vmem:[%s0] sm:$0x3]
    %v55 = vunpack.c.l.b16 %v22
    %v56 = vunpack.c.l.b16 %v23
    %v57 = vunpack.c.l.b16 %v24
    %v58 = vunpack.c.l.b16 %v25
    %v59 = vunpack.c.l.b16 %v26
    %v60 = vunpack.c.l.b16 %v27
    %v61 = vunpack.c.l.b16 %v28
    %v62 = vunpack.c.l.b16 %v29
    %v63 = vunpack.c.l.b16 %v30
    %v64 = vunpack.c.l.b16 %v31
    %v65 = vunpack.c.l.b16 %v32
    %v66 = vunpack.c.l.b16 %v33
    %v67 = vunpack.c.l.b16 %v34
    %v68 = vunpack.c.l.b16 %v35
    %v69 = vunpack.c.l.b16 %v36
    %v70 = vunpack.c.l.b16 %v37
    %v71 = vpack.c.b16 %v56, %v55
    %v72 = vpack.c.b16 %v58, %v57
    %v73 = vpack.c.b16 %v60, %v59
    %v74 = vpack.c.b16 %v62, %v61
    %v75 = vpack.c.b16 %v64, %v63
    %v76 = vpack.c.b16 %v66, %v65
    %v77 = vpack.c.b16 %v68, %v67
    %v78 = vpack.c.b16 %v70, %v69
    %vm79 = vcmask 31744
    %v81 = vsel %vm79, %v71, 0
    %v84 = vsel %vm79, %v72, 0
    %v87 = vsel %vm79, %v73, 0
    %v90 = vsel %vm79, %v74, 0
    %v93 = vsel %vm79, %v75, 0
    %v96 = vsel %vm79, %v76, 0
    %v99 = vsel %vm79, %v77, 0
    %v102 = vsel %vm79, %v78, 0
    %vm104 = vcmask 1041408
    %v106 = vsel %vm104, %v38, 0
    %108 = vmatprep.subr.bf16.mxu0 0
    %109 = vmatpush1.bf16.msra.mxu0 0
    %110 = vmatprep.subr.bf16.mxu0 0
    %111 = vmatpush1.bf16.msra.mxu0 0
    %112 = vmatprep.subr.bf16.mxu0 0
    %113 = vmatpush1.bf16.msra.mxu0 0
    %114 = vmatprep.subr.bf16.mxu0 0
    %115 = vmatpush1.bf16.msra.mxu0 0
    %116 = vmatprep.subr.bf16.mxu0 0
    %117 = vmatpush1.bf16.msra.mxu0 0
    %118 = vmatprep.subr.bf16.mxu0 0
    %119 = vmatpush1.bf16.msra.mxu0 0
    %120 = vmatprep.subr.bf16.mxu0 0
    %121 = vmatpush1.bf16.msra.mxu0 0
    %122 = vmatprep.subr.bf16.mxu0 0
    %123 = vmatpush1.bf16.msra.mxu0 %v106
    %124 = vmatprep.subr.bf16.mxu0 0
    %125 = vmatpush2.bf16.msra.mxu0 0
    %126 = vmatprep.subr.bf16.mxu0 0
    %127 = vmatpush2.bf16.msra.mxu0 0
    %128 = vmatprep.subr.bf16.mxu0 0
    %129 = vmatpush2.bf16.msra.mxu0 0
    %130 = vmatprep.subr.bf16.mxu0 0
    %131 = vmatpush2.bf16.msra.mxu0 0
    %132 = vmatprep.subr.bf16.mxu0 0
    %133 = vmatpush2.bf16.msra.mxu0 0
    %134 = vmatprep.subr.bf16.mxu0 0
    %135 = vmatpush2.bf16.msra.mxu0 0
    %136 = vmatprep.subr.bf16.mxu0 0
    %137 = vmatpush2.bf16.msra.mxu0 0
    %138 = vmatprep.subr.bf16.mxu0 0
    %139 = vmatpush2.bf16.msra.mxu0 0
    %140 = vmatprep.mubr.bf16.mxu0 0
    %141 = vmatmul.mubr.bf16.gmra.mxu0 %v81
    %v142 = vpop.f32.mrf.mxu0
    %v143 = vadd.f32 0.0, %v142
    %v144 = vpop.f32.mrf.mxu0
    %v145 = vpop.f32.mrf.mxu0
    %v146 = vadd.f32 0.0, %v145
    %v147 = vpop.f32.mrf.mxu0
    %148 = vmatprep.mubr.bf16.mxu0 0
    %149 = vmatmul.mubr.bf16.gmra.mxu0 %v84
    %v150 = vpop.f32.mrf.mxu0
    %v151 = vadd.f32 0.0, %v150
    %v152 = vpop.f32.mrf.mxu0
    %v153 = vpop.f32.mrf.mxu0
    %v154 = vadd.f32 0.0, %v153
    %v155 = vpop.f32.mrf.mxu0
    %156 = vmatprep.mubr.bf16.mxu0 0
    %157 = vmatmul.mubr.bf16.gmra.mxu0 %v87
    %v158 = vpop.f32.mrf.mxu0
    %v159 = vadd.f32 0.0, %v158
    %v160 = vpop.f32.mrf.mxu0
    %v161 = vpop.f32.mrf.mxu0
    %v162 = vadd.f32 0.0, %v161
    %v163 = vpop.f32.mrf.mxu0
    %164 = vmatprep.mubr.bf16.mxu0 0
    %165 = vmatmul.mubr.bf16.gmra.mxu0 %v90
    %v166 = vpop.f32.mrf.mxu0
    %v167 = vadd.f32 0.0, %v166
    %v168 = vpop.f32.mrf.mxu0
    %v169 = vpop.f32.mrf.mxu0
    %v170 = vadd.f32 0.0, %v169
    %v171 = vpop.f32.mrf.mxu0
    %172 = vmatprep.mubr.bf16.mxu0 0
    %173 = vmatmul.mubr.bf16.gmra.mxu0 %v93
    %v174 = vpop.f32.mrf.mxu0
    %v175 = vadd.f32 0.0, %v174
    %v176 = vpop.f32.mrf.mxu0
    %v177 = vpop.f32.mrf.mxu0
    %v178 = vadd.f32 0.0, %v177
    %v179 = vpop.f32.mrf.mxu0
    %180 = vmatprep.mubr.bf16.mxu0 0
    %181 = vmatmul.mubr.bf16.gmra.mxu0 %v96
    %v182 = vpop.f32.mrf.mxu0
    %v183 = vadd.f32 0.0, %v182
    %v184 = vpop.f32.mrf.mxu0
    %v185 = vpop.f32.mrf.mxu0
    %v186 = vadd.f32 0.0, %v185
    %v187 = vpop.f32.mrf.mxu0
    %188 = vmatprep.mubr.bf16.mxu0 0
    %189 = vmatmul.mubr.bf16.gmra.mxu0 %v99
    %v190 = vpop.f32.mrf.mxu0
    %v191 = vadd.f32 0.0, %v190
    %v192 = vpop.f32.mrf.mxu0
    %v193 = vpop.f32.mrf.mxu0
    %v194 = vadd.f32 0.0, %v193
    %v195 = vpop.f32.mrf.mxu0
    %196 = vmatprep.mubr.bf16.mxu0 0
    %197 = vmatmul.mubr.bf16.gmra.mxu0 %v102
    %v198 = vpop.f32.mrf.mxu0
    %v199 = vadd.f32 0.0, %v198
    %v200 = vpop.f32.mrf.mxu0
    %v201 = vpop.f32.mrf.mxu0
    %v202 = vadd.f32 0.0, %v201
    %v203 = vpop.f32.mrf.mxu0
    %204 = vdwg.mxu0
    %v205 = vld [vmem:[%s3] sm:$0xff]
    %v206 = vld [vmem:[%s3 + $0x8] sm:$0xff]
    %v207 = vld [vmem:[%s3 + $0x10] sm:$0xff]
    %v208 = vld [vmem:[%s3 + $0x18] sm:$0xff]
    %v209 = vld [vmem:[%s3 + $0x20] sm:$0xff]
    %v210 = vld [vmem:[%s3 + $0x28] sm:$0xff]
    %v211 = vld [vmem:[%s3 + $0x30] sm:$0xff]
    %v212 = vld [vmem:[%s3 + $0x38] sm:$0xff]
    %v213 = vld [vmem:[%s3 + $0x40] sm:$0xff]
    %v214 = vld [vmem:[%s3 + $0x48] sm:$0xff]
    %v215 = vld [vmem:[%s3 + $0x50] sm:$0xff]
    %v216 = vld [vmem:[%s3 + $0x58] sm:$0xff]
    %v217 = vld [vmem:[%s3 + $0x60] sm:$0xff]
    %v218 = vld [vmem:[%s3 + $0x68] sm:$0xff]
    %v219 = vld [vmem:[%s3 + $0x70] sm:$0xff]
    %v220 = vld [vmem:[%s3 + $0x78] sm:$0xff]
    %222 = vset.pattern.permute.xlu0 0
    %223 = vperm.xlu0 %222, %v205
    %v224 = vpop.permute.xlu0 %223
    %227 = vset.pattern.permute.xlu0 0
    %228 = vperm.xlu0 %227, %v206
    %v229 = vpop.permute.xlu0 %228
    %232 = vset.pattern.permute.xlu0 0
    %233 = vperm.xlu0 %232, %v207
    %v234 = vpop.permute.xlu0 %233
    %237 = vset.pattern.permute.xlu0 0
    %238 = vperm.xlu0 %237, %v208
    %v239 = vpop.permute.xlu0 %238
    %242 = vset.pattern.permute.xlu0 0
    %243 = vperm.xlu0 %242, %v209
    %v244 = vpop.permute.xlu0 %243
    %247 = vset.pattern.permute.xlu0 0
    %248 = vperm.xlu0 %247, %v210
    %v249 = vpop.permute.xlu0 %248
    %252 = vset.pattern.permute.xlu0 0
    %253 = vperm.xlu0 %252, %v211
    %v254 = vpop.permute.xlu0 %253
    %257 = vset.pattern.permute.xlu0 0
    %258 = vperm.xlu0 %257, %v212
    %v259 = vpop.permute.xlu0 %258
    %262 = vset.pattern.permute.xlu0 0
    %263 = vperm.xlu0 %262, %v213
    %v264 = vpop.permute.xlu0 %263
    %267 = vset.pattern.permute.xlu0 0
    %268 = vperm.xlu0 %267, %v214
    %v269 = vpop.permute.xlu0 %268
    %272 = vset.pattern.permute.xlu0 0
    %273 = vperm.xlu0 %272, %v215
    %v274 = vpop.permute.xlu0 %273
    %277 = vset.pattern.permute.xlu0 0
    %278 = vperm.xlu0 %277, %v216
    %v279 = vpop.permute.xlu0 %278
    %282 = vset.pattern.permute.xlu0 0
    %283 = vperm.xlu0 %282, %v217
    %v284 = vpop.permute.xlu0 %283
    %287 = vset.pattern.permute.xlu0 0
    %288 = vperm.xlu0 %287, %v218
    %v289 = vpop.permute.xlu0 %288
    %292 = vset.pattern.permute.xlu0 0
    %293 = vperm.xlu0 %292, %v219
    %v294 = vpop.permute.xlu0 %293
    %297 = vset.pattern.permute.xlu0 0
    %298 = vperm.xlu0 %297, %v220
    %v299 = vpop.permute.xlu0 %298
    %v301 = vsub.f32 %v143, %v224
    %v302 = vsub.f32 %v146, %v229
    %v303 = vsub.f32 %v151, %v234
    %v304 = vsub.f32 %v154, %v239
    %v305 = vsub.f32 %v159, %v244
    %v306 = vsub.f32 %v162, %v249
    %v307 = vsub.f32 %v167, %v254
    %v308 = vsub.f32 %v170, %v259
    %v309 = vsub.f32 %v175, %v264
    %v310 = vsub.f32 %v178, %v269
    %v311 = vsub.f32 %v183, %v274
    %v312 = vsub.f32 %v186, %v279
    %v313 = vsub.f32 %v191, %v284
    %v314 = vsub.f32 %v194, %v289
    %v315 = vsub.f32 %v199, %v294
    %v316 = vsub.f32 %v202, %v299
    %v317 = vld [vmem:[%s1] sm:$0x1]
    %v319 = vlaneseq
    %v320 = vshrl.u32 %v319, 7
    %v321 = vsub.s32 0, %v320
    %v322 = vrot.slane %v317, %v321
    %v324 = vsub.f32 %v301, %v322
    %v325 = vsub.f32 %v302, %v322
    %v326 = vsub.f32 %v303, %v322
    %v327 = vsub.f32 %v304, %v322
    %v328 = vsub.f32 %v305, %v322
    %v329 = vsub.f32 %v306, %v322
    %v330 = vsub.f32 %v307, %v322
    %v331 = vsub.f32 %v308, %v322
    %v332 = vsub.f32 %v309, %v322
    %v333 = vsub.f32 %v310, %v322
    %v334 = vsub.f32 %v311, %v322
    %v335 = vsub.f32 %v312, %v322
    %v336 = vsub.f32 %v313, %v322
    %v337 = vsub.f32 %v314, %v322
    %v338 = vsub.f32 %v315, %v322
    %v339 = vsub.f32 %v316, %v322
    %v340 = vmin.f32 %v324, 0.0
    %v341 = vmin.f32 %v325, 0.0
    %v342 = vmin.f32 %v326, 0.0
    %v343 = vmin.f32 %v327, 0.0
    %v344 = vmin.f32 %v328, 0.0
    %v345 = vmin.f32 %v329, 0.0
    %v346 = vmin.f32 %v330, 0.0
    %v347 = vmin.f32 %v331, 0.0
    %v348 = vmin.f32 %v332, 0.0
    %v349 = vmin.f32 %v333, 0.0
    %v350 = vmin.f32 %v334, 0.0
    %v351 = vmin.f32 %v335, 0.0
    %v352 = vmin.f32 %v336, 0.0
    %v353 = vmin.f32 %v337, 0.0
    %v354 = vmin.f32 %v338, 0.0
    %v355 = vmin.f32 %v339, 0.0
    %v356 = vmul.f32 %v340, 1.442695
    %v357 = vpow.pop %v356
    %v358 = vmul.f32 %v341, 1.442695
    %v359 = vpow.pop %v358
    %v360 = vmul.f32 %v342, 1.442695
    %v361 = vpow.pop %v360
    %v362 = vmul.f32 %v343, 1.442695
    %v363 = vpow.pop %v362
    %v364 = vmul.f32 %v344, 1.442695
    %v365 = vpow.pop %v364
    %v366 = vmul.f32 %v345, 1.442695
    %v367 = vpow.pop %v366
    %v368 = vmul.f32 %v346, 1.442695
    %v369 = vpow.pop %v368
    %v370 = vmul.f32 %v347, 1.442695
    %v371 = vpow.pop %v370
    %v372 = vmul.f32 %v348, 1.442695
    %v373 = vpow.pop %v372
    %v374 = vmul.f32 %v349, 1.442695
    %v375 = vpow.pop %v374
    %v376 = vmul.f32 %v350, 1.442695
    %v377 = vpow.pop %v376
    %v378 = vmul.f32 %v351, 1.442695
    %v379 = vpow.pop %v378
    %v380 = vmul.f32 %v352, 1.442695
    %v381 = vpow.pop %v380
    %v382 = vmul.f32 %v353, 1.442695
    %v383 = vpow.pop %v382
    %v384 = vmul.f32 %v354, 1.442695
    %v385 = vpow.pop %v384
    %v386 = vmul.f32 %v355, 1.442695
    %v387 = vpow.pop %v386
    %v388 = vpack.c.bf16 %v359, %v357
    %v389 = vpack.c.bf16 %v363, %v361
    %v390 = vpack.c.bf16 %v367, %v365
    %v391 = vpack.c.bf16 %v371, %v369
    %v392 = vpack.c.bf16 %v375, %v373
    %v393 = vpack.c.bf16 %v379, %v377
    %v394 = vpack.c.bf16 %v383, %v381
    %v395 = vpack.c.bf16 %v387, %v385
    %v396 = vld [vmem:[%s4] sm:$0xf]
    %v397 = vld [vmem:[%s4 + $0x4] sm:$0xf]
    %v398 = vld [vmem:[%s4 + $0x8] sm:$0xf]
    %v399 = vld [vmem:[%s4 + $0xc] sm:$0xf]
    %v400 = vld [vmem:[%s4 + $0x10] sm:$0xf]
    %v401 = vld [vmem:[%s4 + $0x14] sm:$0xf]
    %v402 = vld [vmem:[%s4 + $0x18] sm:$0xf]
    %v403 = vld [vmem:[%s4 + $0x1c] sm:$0xf]
    %v404 = vld [vmem:[%s4 + $0x20] sm:$0xf]
    %v405 = vld [vmem:[%s4 + $0x24] sm:$0xf]
    %v406 = vld [vmem:[%s4 + $0x28] sm:$0xf]
    %v407 = vld [vmem:[%s4 + $0x2c] sm:$0xf]
    %v408 = vld [vmem:[%s4 + $0x30] sm:$0xf]
    %v409 = vld [vmem:[%s4 + $0x34] sm:$0xf]
    %v410 = vld [vmem:[%s4 + $0x38] sm:$0xf]
    %v411 = vld [vmem:[%s4 + $0x3c] sm:$0xf]
    %v412 = vld [vmem:[%s4 + $0x40] sm:$0xf]
    %v413 = vld [vmem:[%s4 + $0x44] sm:$0xf]
    %v432 = vunpack.c.l.b16 %v396
    %v433 = vunpack.c.l.b16 %v397
    %v434 = vunpack.c.l.b16 %v398
    %v435 = vunpack.c.l.b16 %v399
    %v436 = vunpack.c.l.b16 %v400
    %v437 = vunpack.c.l.b16 %v401
    %v438 = vunpack.c.l.b16 %v402
    %v439 = vunpack.c.l.b16 %v403
    %v440 = vunpack.c.l.b16 %v404
    %v441 = vunpack.c.l.b16 %v405
    %v442 = vunpack.c.l.b16 %v406
    %v443 = vunpack.c.l.b16 %v407
    %v444 = vunpack.c.l.b16 %v408
    %v445 = vunpack.c.l.b16 %v409
    %v446 = vunpack.c.l.b16 %v410
    %v447 = vunpack.c.l.b16 %v411
    %v448 = vunpack.c.l.b16 %v412
    %v449 = vunpack.c.l.b16 %v413
    %v450 = vpack.c.b16 %v433, %v432
    %v451 = vpack.c.b16 %v435, %v434
    %v452 = vpack.c.b16 %v437, %v436
    %v453 = vpack.c.b16 %v439, %v438
    %v454 = vpack.c.b16 %v441, %v440
    %v455 = vpack.c.b16 %v443, %v442
    %v456 = vpack.c.b16 %v445, %v444
    %v457 = vpack.c.b16 %v447, %v446
    %v458 = vpack.c.b16 %v449, %v448
    %468 = vmatprep.subr.bf16.mxu0 0
    %469 = vmatpush1.bf16.msra.mxu0 %v395
    %470 = vmatprep.subr.bf16.mxu0 0
    %471 = vmatpush1.bf16.msra.mxu0 %v394
    %472 = vmatprep.subr.bf16.mxu0 0
    %473 = vmatpush1.bf16.msra.mxu0 %v393
    %474 = vmatprep.subr.bf16.mxu0 0
    %475 = vmatpush1.bf16.msra.mxu0 %v392
    %476 = vmatprep.subr.bf16.mxu0 0
    %477 = vmatpush1.bf16.msra.mxu0 %v391
    %478 = vmatprep.subr.bf16.mxu0 0
    %479 = vmatpush1.bf16.msra.mxu0 %v390
    %480 = vmatprep.subr.bf16.mxu0 0
    %481 = vmatpush1.bf16.msra.mxu0 %v389
    %482 = vmatprep.subr.bf16.mxu0 0
    %483 = vmatpush1.bf16.msra.mxu0 %v388
    %484 = vmatprep.subr.bf16.mxu0 0
    %485 = vmatpush2.bf16.msra.mxu0 0
    %486 = vmatprep.subr.bf16.mxu0 0
    %487 = vmatpush2.bf16.msra.mxu0 0
    %488 = vmatprep.subr.bf16.mxu0 0
    %489 = vmatpush2.bf16.msra.mxu0 0
    %490 = vmatprep.subr.bf16.mxu0 0
    %491 = vmatpush2.bf16.msra.mxu0 0
    %492 = vmatprep.subr.bf16.mxu0 0
    %493 = vmatpush2.bf16.msra.mxu0 0
    %494 = vmatprep.subr.bf16.mxu0 0
    %495 = vmatpush2.bf16.msra.mxu0 0
    %496 = vmatprep.subr.bf16.mxu0 0
    %497 = vmatpush2.bf16.msra.mxu0 0
    %498 = vmatprep.subr.bf16.mxu0 0
    %499 = vmatpush2.bf16.msra.mxu0 0
    %500 = vmatprep.mubr.bf16.mxu0 0
    %501 = vmatmul.mubr.bf16.gmra.mxu0 %v450
    %v502 = vpop.f32.mrf.mxu0
    %v503 = vadd.f32 0.0, %v502
    %v504 = vpop.f32.mrf.mxu0
    %v505 = vpop.f32.mrf.mxu0
    %v506 = vadd.f32 0.0, %v505
    %v507 = vpop.f32.mrf.mxu0
    %508 = vmatprep.mubr.bf16.mxu0 0
    %509 = vmatmul.mubr.bf16.gmra.mxu0 %v451
    %v510 = vpop.f32.mrf.mxu0
    %v511 = vadd.f32 0.0, %v510
    %v512 = vpop.f32.mrf.mxu0
    %v513 = vpop.f32.mrf.mxu0
    %v514 = vadd.f32 0.0, %v513
    %v515 = vpop.f32.mrf.mxu0
    %516 = vmatprep.mubr.bf16.mxu0 0
    %517 = vmatmul.mubr.bf16.gmra.mxu0 %v452
    %v518 = vpop.f32.mrf.mxu0
    %v519 = vadd.f32 0.0, %v518
    %v520 = vpop.f32.mrf.mxu0
    %v521 = vpop.f32.mrf.mxu0
    %v522 = vadd.f32 0.0, %v521
    %v523 = vpop.f32.mrf.mxu0
    %524 = vmatprep.mubr.bf16.mxu0 0
    %525 = vmatmul.mubr.bf16.gmra.mxu0 %v453
    %v526 = vpop.f32.mrf.mxu0
    %v527 = vadd.f32 0.0, %v526
    %v528 = vpop.f32.mrf.mxu0
    %v529 = vpop.f32.mrf.mxu0
    %v530 = vadd.f32 0.0, %v529
    %v531 = vpop.f32.mrf.mxu0
    %532 = vmatprep.mubr.bf16.mxu0 0
    %533 = vmatmul.mubr.bf16.gmra.mxu0 %v454
    %v534 = vpop.f32.mrf.mxu0
    %v535 = vadd.f32 0.0, %v534
    %v536 = vpop.f32.mrf.mxu0
    %v537 = vpop.f32.mrf.mxu0
    %v538 = vadd.f32 0.0, %v537
    %v539 = vpop.f32.mrf.mxu0
    %540 = vmatprep.mubr.bf16.mxu0 0
    %541 = vmatmul.mubr.bf16.gmra.mxu0 %v455
    %v542 = vpop.f32.mrf.mxu0
    %v543 = vadd.f32 0.0, %v542
    %v544 = vpop.f32.mrf.mxu0
    %v545 = vpop.f32.mrf.mxu0
    %v546 = vadd.f32 0.0, %v545
    %v547 = vpop.f32.mrf.mxu0
    %548 = vmatprep.mubr.bf16.mxu0 0
    %549 = vmatmul.mubr.bf16.gmra.mxu0 %v456
    %v550 = vpop.f32.mrf.mxu0
    %v551 = vadd.f32 0.0, %v550
    %v552 = vpop.f32.mrf.mxu0
    %v553 = vpop.f32.mrf.mxu0
    %v554 = vadd.f32 0.0, %v553
    %v555 = vpop.f32.mrf.mxu0
    %556 = vmatprep.mubr.bf16.mxu0 0
    %557 = vmatmul.mubr.bf16.gmra.mxu0 %v457
    %v558 = vpop.f32.mrf.mxu0
    %v559 = vadd.f32 0.0, %v558
    %v560 = vpop.f32.mrf.mxu0
    %v561 = vpop.f32.mrf.mxu0
    %v562 = vadd.f32 0.0, %v561
    %v563 = vpop.f32.mrf.mxu0
    %564 = vmatprep.mubr.bf16.mxu0 0
    %565 = vmatmul.mubr.bf16.gmra.mxu0 %v458
    %v566 = vpop.f32.mrf.mxu0
    %v567 = vadd.f32 0.0, %v566
    %v568 = vpop.f32.mrf.mxu0
    %v569 = vpop.f32.mrf.mxu0
    %v570 = vpop.f32.mrf.mxu0
    %571 = vdwg.mxu0
    %v572 = vmul.f32 %v503, %v503
    %v573 = vmul.f32 %v506, %v506
    %v574 = vmul.f32 %v511, %v511
    %v575 = vmul.f32 %v514, %v514
    %v576 = vmul.f32 %v519, %v519
    %v577 = vmul.f32 %v522, %v522
    %v578 = vmul.f32 %v527, %v527
    %v579 = vmul.f32 %v530, %v530
    %v580 = vmul.f32 %v535, %v535
    %v581 = vmul.f32 %v538, %v538
    %v582 = vmul.f32 %v543, %v543
    %v583 = vmul.f32 %v546, %v546
    %v584 = vmul.f32 %v551, %v551
    %v585 = vmul.f32 %v554, %v554
    %v586 = vmul.f32 %v559, %v559
    %v587 = vmul.f32 %v562, %v562
    %v588 = vadd.f32 %v572, %v573
    %v589 = vadd.f32 %v588, %v574
    %v590 = vadd.f32 %v589, %v575
    %v591 = vadd.f32 %v590, %v576
    %v592 = vadd.f32 %v591, %v577
    %v593 = vadd.f32 %v592, %v578
    %v594 = vadd.f32 %v593, %v579
    %v595 = vadd.f32 %v594, %v580
    %v596 = vadd.f32 %v595, %v581
    %v597 = vadd.f32 %v596, %v582
    %v598 = vadd.f32 %v597, %v583
    %v599 = vadd.f32 %v598, %v584
    %v600 = vadd.f32 %v599, %v585
    %v601 = vadd.f32 %v600, %v586
    %v602 = vadd.f32 %v601, %v587
    %v603 = vrot.slane %v602, 4
    %v604 = vadd.f32 %v602, %v603
    %v605 = vrot.slane %v604, 2
    %v606 = vadd.f32 %v604, %v605
    %v607 = vrot.slane %v606, 1
    %v608 = vadd.f32 %v606, %v607
    %v609 = vadd.f32 %v567, 0.2
    %v610 = vsub.f32 1.3, %v608
    %v611 = vmax.f32 %v610, 0.0
    %v612 = vadd.f32 %v611, 0.05
    %v613 = vrsqrt.pop %v612
    %v614 = vmul.f32 %v612, %v613
    %vm615 = vcmp.eq.f32.partialorder %v612, inf
    %v616 = vsel %vm615, %v612, %v614
    %vm617 = vcmp.eq.f32.partialorder %v612, 0.0
    %v618 = vand.u32 %v612, 2147483648
    %v619 = vsel %vm617, %v618, %v616
    %v620 = vsub.f32 %v609, %v619
    %621 = vst [vmem:[#allocation2] sm:$0x1] %v620
    // Predicated region
    $region22: #{tpu_custom_call.1} parent=1 // pred_check
      _
    $region23: #{tpu_custom_call.1} parent=1 // pred_check_branch
      %623 = sbr.rel (0) target = $region25
    $region24: #{tpu_custom_call.1} parent=1 // pred_region
      %s625 = ssub.s32 16, 16
      %626 = vsyncadd [#allocation3], %s625
      %s628 = sshll.u32 [#allocation2], 4
      %s629 = int_to_ptr.vmem [resolvable:$true] %s628
      %631 = dma.vmem_to_hbm [thread:$0]  %s629, 16, %s5, [#allocation3]
    $region25: #{tpu_custom_call.1} parent=1 // pred_fallthru
      _
    // Predicated region
    $region26: #{tpu_custom_call.1} parent=1 // pred_check
      _
    $region27: #{tpu_custom_call.1} parent=1 // pred_check_branch
      %633 = sbr.rel (0) target = $region29
    $region28: #{tpu_custom_call.1} parent=1 // pred_region
      %634 = dma.done [#allocation3], 16
    $region29: #{tpu_custom_call.1} parent=1 // pred_fallthru
      _
    %635 = vsyncpa [#allocation3], 1

// kernel: tpu_custom_call.1
$region0: #{tpu_custom_call.1}
  #allocation0 [shape = 'u32[]', space=smem, size = 0x4, offset = 0x4, fixed_abs, tag = 'smem constant byte address 0x4 - core index']
  #allocation1 [shape = 'u32[144,128]{1,0:T(1,128)}', space=vmem, size = 0x12000, scoped, tag = 'internal scratch']
  %s0 = inlined_call_operand.vmem [shape: bf16[4,128], index: 0, kind: input, shape index: {}]
  %s1 = inlined_call_operand.vmem [shape: f32[1,128], index: 1, kind: input, shape index: {}]
  %s2 = inlined_call_operand.vmem [shape: bf16[128,4], index: 2, kind: input, shape index: {}]
  %s3 = inlined_call_operand.vmem [shape: f32[128,1], index: 3, kind: input, shape index: {}]
  %s4 = inlined_call_operand.vmem [shape: bf16[144,128], index: 4, kind: input, shape index: {}]
  %s5 = inlined_call_operand.hbm [shape: f32[1,128], index: 5, kind: output, shape index: {}]
  %s6 = sld [smem:[#allocation0]]
  $region30: #{tpu_custom_call.1} parent=0
    _
  %s8 = ssub.s32 1, %s6
  %s9 = scalar_select 0, %s8, %s6
  $region1: #{tpu_custom_call.1} parent=0
    #allocation2 [shape = 'u8[512]{0}', space=vmem, size = 0x400, scoped, tag = 'output window, operand 0, single buffered']
    #allocation3 [shape = 's32[1]{0}', space=sflag, size = 0x4, scoped, tag = 'scoped memory for tpu_custom_call.1']
    %10 = vsyncpa [#allocation3], 0
    // Predicated region
    $region2: #{tpu_custom_call.1} parent=1 // pred_check
      _
    $region3: #{tpu_custom_call.1} parent=1 // pred_check_branch
      %12 = sbr.rel (0) target = $region5
    $region4: #{tpu_custom_call.1} parent=1 // pred_region
      _
    $region5: #{tpu_custom_call.1} parent=1 // pred_fallthru
      _
    // Predicated region
    $region6: #{tpu_custom_call.1} parent=1 // pred_check
      _
    $region7: #{tpu_custom_call.1} parent=1 // pred_check_branch
      %14 = sbr.rel (0) target = $region9
    $region8: #{tpu_custom_call.1} parent=1 // pred_region
      _
    $region9: #{tpu_custom_call.1} parent=1 // pred_fallthru
      _
    // Predicated region
    $region10: #{tpu_custom_call.1} parent=1 // pred_check
      _
    $region11: #{tpu_custom_call.1} parent=1 // pred_check_branch
      %16 = sbr.rel (0) target = $region13
    $region12: #{tpu_custom_call.1} parent=1 // pred_region
      _
    $region13: #{tpu_custom_call.1} parent=1 // pred_fallthru
      _
    // Predicated region
    $region14: #{tpu_custom_call.1} parent=1 // pred_check
      _
    $region15: #{tpu_custom_call.1} parent=1 // pred_check_branch
      %18 = sbr.rel (0) target = $region17
    $region16: #{tpu_custom_call.1} parent=1 // pred_region
      _
    $region17: #{tpu_custom_call.1} parent=1 // pred_fallthru
      _
    // Predicated region
    $region18: #{tpu_custom_call.1} parent=1 // pred_check
      _
    $region19: #{tpu_custom_call.1} parent=1 // pred_check_branch
      %20 = sbr.rel (0) target = $region21
    $region20: #{tpu_custom_call.1} parent=1 // pred_region
      _
    $region21: #{tpu_custom_call.1} parent=1 // pred_fallthru
      _
    %v22 = vld [vmem:[%s2] sm:$0xf]
    %v23 = vld [vmem:[%s2 + $0x4] sm:$0xf]
    %v24 = vld [vmem:[%s2 + $0x8] sm:$0xf]
    %v25 = vld [vmem:[%s2 + $0xc] sm:$0xf]
    %v26 = vld [vmem:[%s2 + $0x10] sm:$0xf]
    %v27 = vld [vmem:[%s2 + $0x14] sm:$0xf]
    %v28 = vld [vmem:[%s2 + $0x18] sm:$0xf]
    %v29 = vld [vmem:[%s2 + $0x1c] sm:$0xf]
    %v30 = vld [vmem:[%s2 + $0x20] sm:$0xf]
    %v31 = vld [vmem:[%s2 + $0x24] sm:$0xf]
    %v32 = vld [vmem:[%s2 + $0x28] sm:$0xf]
    %v33 = vld [vmem:[%s2 + $0x2c] sm:$0xf]
    %v34 = vld [vmem:[%s2 + $0x30] sm:$0xf]
    %v35 = vld [vmem:[%s2 + $0x34] sm:$0xf]
    %v36 = vld [vmem:[%s2 + $0x38] sm:$0xf]
    %v37 = vld [vmem:[%s2 + $0x3c] sm:$0xf]
    %v38 = vld [vmem:[%s0] sm:$0x3]
    %v55 = vunpack.c.l.b16 %v22
    %v56 = vunpack.c.l.b16 %v23
    %v57 = vunpack.c.l.b16 %v24
    %v58 = vunpack.c.l.b16 %v25
    %v59 = vunpack.c.l.b16 %v26
    %v60 = vunpack.c.l.b16 %v27
    %v61 = vunpack.c.l.b16 %v28
    %v62 = vunpack.c.l.b16 %v29
    %v63 = vunpack.c.l.b16 %v30
    %v64 = vunpack.c.l.b16 %v31
    %v65 = vunpack.c.l.b16 %v32
    %v66 = vunpack.c.l.b16 %v33
    %v67 = vunpack.c.l.b16 %v34
    %v68 = vunpack.c.l.b16 %v35
    %v69 = vunpack.c.l.b16 %v36
    %v70 = vunpack.c.l.b16 %v37
    %v71 = vpack.c.b16 %v56, %v55
    %v72 = vpack.c.b16 %v58, %v57
    %v73 = vpack.c.b16 %v60, %v59
    %v74 = vpack.c.b16 %v62, %v61
    %v75 = vpack.c.b16 %v64, %v63
    %v76 = vpack.c.b16 %v66, %v65
    %v77 = vpack.c.b16 %v68, %v67
    %v78 = vpack.c.b16 %v70, %v69
    %vm79 = vcmask 31744
    %v81 = vsel %vm79, %v71, 0
    %v84 = vsel %vm79, %v72, 0
    %v87 = vsel %vm79, %v73, 0
    %v90 = vsel %vm79, %v74, 0
    %v93 = vsel %vm79, %v75, 0
    %v96 = vsel %vm79, %v76, 0
    %v99 = vsel %vm79, %v77, 0
    %v102 = vsel %vm79, %v78, 0
    %vm104 = vcmask 1041408
    %v106 = vsel %vm104, %v38, 0
    %108 = vmatprep.subr.bf16.mxu0 0
    %109 = vmatpush1.bf16.msra.mxu0 0
    %110 = vmatprep.subr.bf16.mxu0 0
    %111 = vmatpush1.bf16.msra.mxu0 0
    %112 = vmatprep.subr.bf16.mxu0 0
    %113 = vmatpush1.bf16.msra.mxu0 0
    %114 = vmatprep.subr.bf16.mxu0 0
    %115 = vmatpush1.bf16.msra.mxu0 0
    %116 = vmatprep.subr.bf16.mxu0 0
    %117 = vmatpush1.bf16.msra.mxu0 0
    %118 = vmatprep.subr.bf16.mxu0 0
    %119 = vmatpush1.bf16.msra.mxu0 0
    %120 = vmatprep.subr.bf16.mxu0 0
    %121 = vmatpush1.bf16.msra.mxu0 0
    %122 = vmatprep.subr.bf16.mxu0 0
    %123 = vmatpush1.bf16.msra.mxu0 %v106
    %124 = vmatprep.subr.bf16.mxu0 0
    %125 = vmatpush2.bf16.msra.mxu0 0
    %126 = vmatprep.subr.bf16.mxu0 0
    %127 = vmatpush2.bf16.msra.mxu0 0
    %128 = vmatprep.subr.bf16.mxu0 0
    %129 = vmatpush2.bf16.msra.mxu0 0
    %130 = vmatprep.subr.bf16.mxu0 0
    %131 = vmatpush2.bf16.msra.mxu0 0
    %132 = vmatprep.subr.bf16.mxu0 0
    %133 = vmatpush2.bf16.msra.mxu0 0
    %134 = vmatprep.subr.bf16.mxu0 0
    %135 = vmatpush2.bf16.msra.mxu0 0
    %136 = vmatprep.subr.bf16.mxu0 0
    %137 = vmatpush2.bf16.msra.mxu0 0
    %138 = vmatprep.subr.bf16.mxu0 0
    %139 = vmatpush2.bf16.msra.mxu0 0
    %140 = vmatprep.mubr.bf16.mxu0 0
    %141 = vmatmul.mubr.bf16.gmra.mxu0 %v81
    %v142 = vpop.f32.mrf.mxu0
    %v143 = vadd.f32 0.0, %v142
    %v144 = vpop.f32.mrf.mxu0
    %v145 = vpop.f32.mrf.mxu0
    %v146 = vadd.f32 0.0, %v145
    %v147 = vpop.f32.mrf.mxu0
    %148 = vmatprep.mubr.bf16.mxu0 0
    %149 = vmatmul.mubr.bf16.gmra.mxu0 %v84
    %v150 = vpop.f32.mrf.mxu0
    %v151 = vadd.f32 0.0, %v150
    %v152 = vpop.f32.mrf.mxu0
    %v153 = vpop.f32.mrf.mxu0
    %v154 = vadd.f32 0.0, %v153
    %v155 = vpop.f32.mrf.mxu0
    %156 = vmatprep.mubr.bf16.mxu0 0
    %157 = vmatmul.mubr.bf16.gmra.mxu0 %v87
    %v158 = vpop.f32.mrf.mxu0
    %v159 = vadd.f32 0.0, %v158
    %v160 = vpop.f32.mrf.mxu0
    %v161 = vpop.f32.mrf.mxu0
    %v162 = vadd.f32 0.0, %v161
    %v163 = vpop.f32.mrf.mxu0
    %164 = vmatprep.mubr.bf16.mxu0 0
    %165 = vmatmul.mubr.bf16.gmra.mxu0 %v90
    %v166 = vpop.f32.mrf.mxu0
    %v167 = vadd.f32 0.0, %v166
    %v168 = vpop.f32.mrf.mxu0
    %v169 = vpop.f32.mrf.mxu0
    %v170 = vadd.f32 0.0, %v169
    %v171 = vpop.f32.mrf.mxu0
    %172 = vmatprep.mubr.bf16.mxu0 0
    %173 = vmatmul.mubr.bf16.gmra.mxu0 %v93
    %v174 = vpop.f32.mrf.mxu0
    %v175 = vadd.f32 0.0, %v174
    %v176 = vpop.f32.mrf.mxu0
    %v177 = vpop.f32.mrf.mxu0
    %v178 = vadd.f32 0.0, %v177
    %v179 = vpop.f32.mrf.mxu0
    %180 = vmatprep.mubr.bf16.mxu0 0
    %181 = vmatmul.mubr.bf16.gmra.mxu0 %v96
    %v182 = vpop.f32.mrf.mxu0
    %v183 = vadd.f32 0.0, %v182
    %v184 = vpop.f32.mrf.mxu0
    %v185 = vpop.f32.mrf.mxu0
    %v186 = vadd.f32 0.0, %v185
    %v187 = vpop.f32.mrf.mxu0
    %188 = vmatprep.mubr.bf16.mxu0 0
    %189 = vmatmul.mubr.bf16.gmra.mxu0 %v99
    %v190 = vpop.f32.mrf.mxu0
    %v191 = vadd.f32 0.0, %v190
    %v192 = vpop.f32.mrf.mxu0
    %v193 = vpop.f32.mrf.mxu0
    %v194 = vadd.f32 0.0, %v193
    %v195 = vpop.f32.mrf.mxu0
    %196 = vmatprep.mubr.bf16.mxu0 0
    %197 = vmatmul.mubr.bf16.gmra.mxu0 %v102
    %v198 = vpop.f32.mrf.mxu0
    %v199 = vadd.f32 0.0, %v198
    %v200 = vpop.f32.mrf.mxu0
    %v201 = vpop.f32.mrf.mxu0
    %v202 = vadd.f32 0.0, %v201
    %v203 = vpop.f32.mrf.mxu0
    %204 = vdwg.mxu0
    %v205 = vld [vmem:[%s3] sm:$0xff]
    %v206 = vld [vmem:[%s3 + $0x8] sm:$0xff]
    %v207 = vld [vmem:[%s3 + $0x10] sm:$0xff]
    %v208 = vld [vmem:[%s3 + $0x18] sm:$0xff]
    %v209 = vld [vmem:[%s3 + $0x20] sm:$0xff]
    %v210 = vld [vmem:[%s3 + $0x28] sm:$0xff]
    %v211 = vld [vmem:[%s3 + $0x30] sm:$0xff]
    %v212 = vld [vmem:[%s3 + $0x38] sm:$0xff]
    %v213 = vld [vmem:[%s3 + $0x40] sm:$0xff]
    %v214 = vld [vmem:[%s3 + $0x48] sm:$0xff]
    %v215 = vld [vmem:[%s3 + $0x50] sm:$0xff]
    %v216 = vld [vmem:[%s3 + $0x58] sm:$0xff]
    %v217 = vld [vmem:[%s3 + $0x60] sm:$0xff]
    %v218 = vld [vmem:[%s3 + $0x68] sm:$0xff]
    %v219 = vld [vmem:[%s3 + $0x70] sm:$0xff]
    %v220 = vld [vmem:[%s3 + $0x78] sm:$0xff]
    %222 = vset.pattern.permute.xlu0 0
    %223 = vperm.xlu0 %222, %v205
    %v224 = vpop.permute.xlu0 %223
    %227 = vset.pattern.permute.xlu0 0
    %228 = vperm.xlu0 %227, %v206
    %v229 = vpop.permute.xlu0 %228
    %232 = vset.pattern.permute.xlu0 0
    %233 = vperm.xlu0 %232, %v207
    %v234 = vpop.permute.xlu0 %233
    %237 = vset.pattern.permute.xlu0 0
    %238 = vperm.xlu0 %237, %v208
    %v239 = vpop.permute.xlu0 %238
    %242 = vset.pattern.permute.xlu0 0
    %243 = vperm.xlu0 %242, %v209
    %v244 = vpop.permute.xlu0 %243
    %247 = vset.pattern.permute.xlu0 0
    %248 = vperm.xlu0 %247, %v210
    %v249 = vpop.permute.xlu0 %248
    %252 = vset.pattern.permute.xlu0 0
    %253 = vperm.xlu0 %252, %v211
    %v254 = vpop.permute.xlu0 %253
    %257 = vset.pattern.permute.xlu0 0
    %258 = vperm.xlu0 %257, %v212
    %v259 = vpop.permute.xlu0 %258
    %262 = vset.pattern.permute.xlu0 0
    %263 = vperm.xlu0 %262, %v213
    %v264 = vpop.permute.xlu0 %263
    %267 = vset.pattern.permute.xlu0 0
    %268 = vperm.xlu0 %267, %v214
    %v269 = vpop.permute.xlu0 %268
    %272 = vset.pattern.permute.xlu0 0
    %273 = vperm.xlu0 %272, %v215
    %v274 = vpop.permute.xlu0 %273
    %277 = vset.pattern.permute.xlu0 0
    %278 = vperm.xlu0 %277, %v216
    %v279 = vpop.permute.xlu0 %278
    %282 = vset.pattern.permute.xlu0 0
    %283 = vperm.xlu0 %282, %v217
    %v284 = vpop.permute.xlu0 %283
    %287 = vset.pattern.permute.xlu0 0
    %288 = vperm.xlu0 %287, %v218
    %v289 = vpop.permute.xlu0 %288
    %292 = vset.pattern.permute.xlu0 0
    %293 = vperm.xlu0 %292, %v219
    %v294 = vpop.permute.xlu0 %293
    %297 = vset.pattern.permute.xlu0 0
    %298 = vperm.xlu0 %297, %v220
    %v299 = vpop.permute.xlu0 %298
    %v301 = vsub.f32 %v143, %v224
    %v302 = vsub.f32 %v146, %v229
    %v303 = vsub.f32 %v151, %v234
    %v304 = vsub.f32 %v154, %v239
    %v305 = vsub.f32 %v159, %v244
    %v306 = vsub.f32 %v162, %v249
    %v307 = vsub.f32 %v167, %v254
    %v308 = vsub.f32 %v170, %v259
    %v309 = vsub.f32 %v175, %v264
    %v310 = vsub.f32 %v178, %v269
    %v311 = vsub.f32 %v183, %v274
    %v312 = vsub.f32 %v186, %v279
    %v313 = vsub.f32 %v191, %v284
    %v314 = vsub.f32 %v194, %v289
    %v315 = vsub.f32 %v199, %v294
    %v316 = vsub.f32 %v202, %v299
    %v317 = vld [vmem:[%s1] sm:$0x1]
    %v319 = vlaneseq
    %v320 = vshrl.u32 %v319, 7
    %v321 = vsub.s32 0, %v320
    %v322 = vrot.slane %v317, %v321
    %v324 = vsub.f32 %v301, %v322
    %v325 = vsub.f32 %v302, %v322
    %v326 = vsub.f32 %v303, %v322
    %v327 = vsub.f32 %v304, %v322
    %v328 = vsub.f32 %v305, %v322
    %v329 = vsub.f32 %v306, %v322
    %v330 = vsub.f32 %v307, %v322
    %v331 = vsub.f32 %v308, %v322
    %v332 = vsub.f32 %v309, %v322
    %v333 = vsub.f32 %v310, %v322
    %v334 = vsub.f32 %v311, %v322
    %v335 = vsub.f32 %v312, %v322
    %v336 = vsub.f32 %v313, %v322
    %v337 = vsub.f32 %v314, %v322
    %v338 = vsub.f32 %v315, %v322
    %v339 = vsub.f32 %v316, %v322
    %v340 = vmin.f32 %v324, 0.0
    %v341 = vmin.f32 %v325, 0.0
    %v342 = vmin.f32 %v326, 0.0
    %v343 = vmin.f32 %v327, 0.0
    %v344 = vmin.f32 %v328, 0.0
    %v345 = vmin.f32 %v329, 0.0
    %v346 = vmin.f32 %v330, 0.0
    %v347 = vmin.f32 %v331, 0.0
    %v348 = vmin.f32 %v332, 0.0
    %v349 = vmin.f32 %v333, 0.0
    %v350 = vmin.f32 %v334, 0.0
    %v351 = vmin.f32 %v335, 0.0
    %v352 = vmin.f32 %v336, 0.0
    %v353 = vmin.f32 %v337, 0.0
    %v354 = vmin.f32 %v338, 0.0
    %v355 = vmin.f32 %v339, 0.0
    %v356 = vmul.f32 %v340, 1.442695
    %v357 = vpow.pop %v356
    %v358 = vmul.f32 %v341, 1.442695
    %v359 = vpow.pop %v358
    %v360 = vmul.f32 %v342, 1.442695
    %v361 = vpow.pop %v360
    %v362 = vmul.f32 %v343, 1.442695
    %v363 = vpow.pop %v362
    %v364 = vmul.f32 %v344, 1.442695
    %v365 = vpow.pop %v364
    %v366 = vmul.f32 %v345, 1.442695
    %v367 = vpow.pop %v366
    %v368 = vmul.f32 %v346, 1.442695
    %v369 = vpow.pop %v368
    %v370 = vmul.f32 %v347, 1.442695
    %v371 = vpow.pop %v370
    %v372 = vmul.f32 %v348, 1.442695
    %v373 = vpow.pop %v372
    %v374 = vmul.f32 %v349, 1.442695
    %v375 = vpow.pop %v374
    %v376 = vmul.f32 %v350, 1.442695
    %v377 = vpow.pop %v376
    %v378 = vmul.f32 %v351, 1.442695
    %v379 = vpow.pop %v378
    %v380 = vmul.f32 %v352, 1.442695
    %v381 = vpow.pop %v380
    %v382 = vmul.f32 %v353, 1.442695
    %v383 = vpow.pop %v382
    %v384 = vmul.f32 %v354, 1.442695
    %v385 = vpow.pop %v384
    %v386 = vmul.f32 %v355, 1.442695
    %v387 = vpow.pop %v386
    %v388 = vpack.c.bf16 %v359, %v357
    %v389 = vpack.c.bf16 %v363, %v361
    %v390 = vpack.c.bf16 %v367, %v365
    %v391 = vpack.c.bf16 %v371, %v369
    %v392 = vpack.c.bf16 %v375, %v373
    %v393 = vpack.c.bf16 %v379, %v377
    %v394 = vpack.c.bf16 %v383, %v381
    %v395 = vpack.c.bf16 %v387, %v385
    %v396 = vld [vmem:[%s4] sm:$0xf]
    %v397 = vld [vmem:[%s4 + $0x4] sm:$0xf]
    %v398 = vld [vmem:[%s4 + $0x8] sm:$0xf]
    %v399 = vld [vmem:[%s4 + $0xc] sm:$0xf]
    %v400 = vld [vmem:[%s4 + $0x10] sm:$0xf]
    %v401 = vld [vmem:[%s4 + $0x14] sm:$0xf]
    %v402 = vld [vmem:[%s4 + $0x18] sm:$0xf]
    %v403 = vld [vmem:[%s4 + $0x1c] sm:$0xf]
    %v404 = vld [vmem:[%s4 + $0x20] sm:$0xf]
    %v405 = vld [vmem:[%s4 + $0x24] sm:$0xf]
    %v406 = vld [vmem:[%s4 + $0x28] sm:$0xf]
    %v407 = vld [vmem:[%s4 + $0x2c] sm:$0xf]
    %v408 = vld [vmem:[%s4 + $0x30] sm:$0xf]
    %v409 = vld [vmem:[%s4 + $0x34] sm:$0xf]
    %v410 = vld [vmem:[%s4 + $0x38] sm:$0xf]
    %v411 = vld [vmem:[%s4 + $0x3c] sm:$0xf]
    %v412 = vld [vmem:[%s4 + $0x40] sm:$0xf]
    %v413 = vld [vmem:[%s4 + $0x44] sm:$0xf]
    %v432 = vunpack.c.l.b16 %v396
    %v433 = vunpack.c.l.b16 %v397
    %v434 = vunpack.c.l.b16 %v398
    %v435 = vunpack.c.l.b16 %v399
    %v436 = vunpack.c.l.b16 %v400
    %v437 = vunpack.c.l.b16 %v401
    %v438 = vunpack.c.l.b16 %v402
    %v439 = vunpack.c.l.b16 %v403
    %v440 = vunpack.c.l.b16 %v404
    %v441 = vunpack.c.l.b16 %v405
    %v442 = vunpack.c.l.b16 %v406
    %v443 = vunpack.c.l.b16 %v407
    %v444 = vunpack.c.l.b16 %v408
    %v445 = vunpack.c.l.b16 %v409
    %v446 = vunpack.c.l.b16 %v410
    %v447 = vunpack.c.l.b16 %v411
    %v448 = vunpack.c.l.b16 %v412
    %v449 = vunpack.c.l.b16 %v413
    %v450 = vpack.c.b16 %v433, %v432
    %v451 = vpack.c.b16 %v435, %v434
    %v452 = vpack.c.b16 %v437, %v436
    %v453 = vpack.c.b16 %v439, %v438
    %v454 = vpack.c.b16 %v441, %v440
    %v455 = vpack.c.b16 %v443, %v442
    %v456 = vpack.c.b16 %v445, %v444
    %v457 = vpack.c.b16 %v447, %v446
    %v458 = vpack.c.b16 %v449, %v448
    %468 = vmatprep.subr.bf16.mxu0 0
    %469 = vmatpush1.bf16.msra.mxu0 %v395
    %470 = vmatprep.subr.bf16.mxu0 0
    %471 = vmatpush1.bf16.msra.mxu0 %v394
    %472 = vmatprep.subr.bf16.mxu0 0
    %473 = vmatpush1.bf16.msra.mxu0 %v393
    %474 = vmatprep.subr.bf16.mxu0 0
    %475 = vmatpush1.bf16.msra.mxu0 %v392
    %476 = vmatprep.subr.bf16.mxu0 0
    %477 = vmatpush1.bf16.msra.mxu0 %v391
    %478 = vmatprep.subr.bf16.mxu0 0
    %479 = vmatpush1.bf16.msra.mxu0 %v390
    %480 = vmatprep.subr.bf16.mxu0 0
    %481 = vmatpush1.bf16.msra.mxu0 %v389
    %482 = vmatprep.subr.bf16.mxu0 0
    %483 = vmatpush1.bf16.msra.mxu0 %v388
    %484 = vmatprep.subr.bf16.mxu0 0
    %485 = vmatpush2.bf16.msra.mxu0 0
    %486 = vmatprep.subr.bf16.mxu0 0
    %487 = vmatpush2.bf16.msra.mxu0 0
    %488 = vmatprep.subr.bf16.mxu0 0
    %489 = vmatpush2.bf16.msra.mxu0 0
    %490 = vmatprep.subr.bf16.mxu0 0
    %491 = vmatpush2.bf16.msra.mxu0 0
    %492 = vmatprep.subr.bf16.mxu0 0
    %493 = vmatpush2.bf16.msra.mxu0 0
    %494 = vmatprep.subr.bf16.mxu0 0
    %495 = vmatpush2.bf16.msra.mxu0 0
    %496 = vmatprep.subr.bf16.mxu0 0
    %497 = vmatpush2.bf16.msra.mxu0 0
    %498 = vmatprep.subr.bf16.mxu0 0
    %499 = vmatpush2.bf16.msra.mxu0 0
    %500 = vmatprep.mubr.bf16.mxu0 0
    %501 = vmatmul.mubr.bf16.gmra.mxu0 %v450
    %v502 = vpop.f32.mrf.mxu0
    %v503 = vadd.f32 0.0, %v502
    %v504 = vpop.f32.mrf.mxu0
    %v505 = vpop.f32.mrf.mxu0
    %v506 = vadd.f32 0.0, %v505
    %v507 = vpop.f32.mrf.mxu0
    %508 = vmatprep.mubr.bf16.mxu0 0
    %509 = vmatmul.mubr.bf16.gmra.mxu0 %v451
    %v510 = vpop.f32.mrf.mxu0
    %v511 = vadd.f32 0.0, %v510
    %v512 = vpop.f32.mrf.mxu0
    %v513 = vpop.f32.mrf.mxu0
    %v514 = vadd.f32 0.0, %v513
    %v515 = vpop.f32.mrf.mxu0
    %516 = vmatprep.mubr.bf16.mxu0 0
    %517 = vmatmul.mubr.bf16.gmra.mxu0 %v452
    %v518 = vpop.f32.mrf.mxu0
    %v519 = vadd.f32 0.0, %v518
    %v520 = vpop.f32.mrf.mxu0
    %v521 = vpop.f32.mrf.mxu0
    %v522 = vadd.f32 0.0, %v521
    %v523 = vpop.f32.mrf.mxu0
    %524 = vmatprep.mubr.bf16.mxu0 0
    %525 = vmatmul.mubr.bf16.gmra.mxu0 %v453
    %v526 = vpop.f32.mrf.mxu0
    %v527 = vadd.f32 0.0, %v526
    %v528 = vpop.f32.mrf.mxu0
    %v529 = vpop.f32.mrf.mxu0
    %v530 = vadd.f32 0.0, %v529
    %v531 = vpop.f32.mrf.mxu0
    %532 = vmatprep.mubr.bf16.mxu0 0
    %533 = vmatmul.mubr.bf16.gmra.mxu0 %v454
    %v534 = vpop.f32.mrf.mxu0
    %v535 = vadd.f32 0.0, %v534
    %v536 = vpop.f32.mrf.mxu0
    %v537 = vpop.f32.mrf.mxu0
    %v538 = vadd.f32 0.0, %v537
    %v539 = vpop.f32.mrf.mxu0
    %540 = vmatprep.mubr.bf16.mxu0 0
    %541 = vmatmul.mubr.bf16.gmra.mxu0 %v455
    %v542 = vpop.f32.mrf.mxu0
    %v543 = vadd.f32 0.0, %v542
    %v544 = vpop.f32.mrf.mxu0
    %v545 = vpop.f32.mrf.mxu0
    %v546 = vadd.f32 0.0, %v545
    %v547 = vpop.f32.mrf.mxu0
    %548 = vmatprep.mubr.bf16.mxu0 0
    %549 = vmatmul.mubr.bf16.gmra.mxu0 %v456
    %v550 = vpop.f32.mrf.mxu0
    %v551 = vadd.f32 0.0, %v550
    %v552 = vpop.f32.mrf.mxu0
    %v553 = vpop.f32.mrf.mxu0
    %v554 = vadd.f32 0.0, %v553
    %v555 = vpop.f32.mrf.mxu0
    %556 = vmatprep.mubr.bf16.mxu0 0
    %557 = vmatmul.mubr.bf16.gmra.mxu0 %v457
    %v558 = vpop.f32.mrf.mxu0
    %v559 = vadd.f32 0.0, %v558
    %v560 = vpop.f32.mrf.mxu0
    %v561 = vpop.f32.mrf.mxu0
    %v562 = vadd.f32 0.0, %v561
    %v563 = vpop.f32.mrf.mxu0
    %564 = vmatprep.mubr.bf16.mxu0 0
    %565 = vmatmul.mubr.bf16.gmra.mxu0 %v458
    %v566 = vpop.f32.mrf.mxu0
    %v567 = vadd.f32 0.0, %v566
    %v568 = vpop.f32.mrf.mxu0
    %v569 = vpop.f32.mrf.mxu0
    %v570 = vpop.f32.mrf.mxu0
    %571 = vdwg.mxu0
    %v572 = vmul.f32 %v503, %v503
    %v573 = vmul.f32 %v506, %v506
    %v574 = vmul.f32 %v511, %v511
    %v575 = vmul.f32 %v514, %v514
    %v576 = vmul.f32 %v519, %v519
    %v577 = vmul.f32 %v522, %v522
    %v578 = vmul.f32 %v527, %v527
    %v579 = vmul.f32 %v530, %v530
    %v580 = vmul.f32 %v535, %v535
    %v581 = vmul.f32 %v538, %v538
    %v582 = vmul.f32 %v543, %v543
    %v583 = vmul.f32 %v546, %v546
    %v584 = vmul.f32 %v551, %v551
    %v585 = vmul.f32 %v554, %v554
    %v586 = vmul.f32 %v559, %v559
    %v587 = vmul.f32 %v562, %v562
    %v588 = vadd.f32 %v572, %v573
    %v589 = vadd.f32 %v588, %v574
    %v590 = vadd.f32 %v589, %v575
    %v591 = vadd.f32 %v590, %v576
    %v592 = vadd.f32 %v591, %v577
    %v593 = vadd.f32 %v592, %v578
    %v594 = vadd.f32 %v593, %v579
    %v595 = vadd.f32 %v594, %v580
    %v596 = vadd.f32 %v595, %v581
    %v597 = vadd.f32 %v596, %v582
    %v598 = vadd.f32 %v597, %v583
    %v599 = vadd.f32 %v598, %v584
    %v600 = vadd.f32 %v599, %v585
    %v601 = vadd.f32 %v600, %v586
    %v602 = vadd.f32 %v601, %v587
    %v603 = vrot.slane %v602, 4
    %v604 = vadd.f32 %v602, %v603
    %v605 = vrot.slane %v604, 2
    %v606 = vadd.f32 %v604, %v605
    %v607 = vrot.slane %v606, 1
    %v608 = vadd.f32 %v606, %v607
    %v609 = vadd.f32 %v567, 0.2
    %v610 = vsub.f32 1.3, %v608
    %v611 = vmax.f32 %v610, 0.0
    %v612 = vadd.f32 %v611, 0.05
    %v613 = vrsqrt.pop %v612
    %v614 = vmul.f32 %v612, %v613
    %vm615 = vcmp.eq.f32.partialorder %v612, inf
    %v616 = vsel %vm615, %v612, %v614
    %vm617 = vcmp.eq.f32.partialorder %v612, 0.0
    %v618 = vand.u32 %v612, 2147483648
    %v619 = vsel %vm617, %v618, %v616
    %v620 = vsub.f32 %v609, %v619
    %621 = vst [vmem:[#allocation2] sm:$0x1] %v620
    // Predicated region
    $region22: #{tpu_custom_call.1} parent=1 // pred_check
      _
    $region23: #{tpu_custom_call.1} parent=1 // pred_check_branch
      %623 = sbr.rel (0) target = $region25
    $region24: #{tpu_custom_call.1} parent=1 // pred_region
      %s625 = ssub.s32 16, 16
      %626 = vsyncadd [#allocation3], %s625
      %s628 = sshll.u32 [#allocation2], 4
      %s629 = int_to_ptr.vmem [resolvable:$true] %s628
      %631 = dma.vmem_to_hbm [thread:$0]  %s629, 16, %s5, [#allocation3]
    $region25: #{tpu_custom_call.1} parent=1 // pred_fallthru
      _
    // Predicated region
    $region26: #{tpu_custom_call.1} parent=1 // pred_check
      _
    $region27: #{tpu_custom_call.1} parent=1 // pred_check_branch
      %633 = sbr.rel (0) target = $region29
    $region28: #{tpu_custom_call.1} parent=1 // pred_region
      %634 = dma.done [#allocation3], 16
    $region29: #{tpu_custom_call.1} parent=1 // pred_fallthru
      _
    %635 = vsyncpa [#allocation3], 1

</llo_original>
